<compile_context>
chip_gen: v7x
topology: tpu7x:2x2x1
jax: 0.10.0
libtpu: 0.0.40
codegen_flags: <defaults>
</compile_context>

<pallas_src>
import functools

import jax
import jax.numpy as jnp
from jax.experimental import pallas as pl
from jax.experimental.pallas import tpu as pltpu

WEIGHT_DTYPE = jnp.bfloat16   # set jnp.float32 for bit-accurate comparison
_LANE = 128


def _round_up(x, m):
    return (x + m - 1) // m * m


def _pad2d(a, rows=None, cols=None):
    r = rows if rows is not None else a.shape[0]
    c = cols if cols is not None else a.shape[1]
    return jnp.pad(a, ((0, r - a.shape[0]), (0, c - a.shape[1])))


# ----------------------------------------------------------------------------
# Pallas kernel: one-hot label fold + 5-layer MLP + sigmoid, all fused.
# ----------------------------------------------------------------------------
def _disc_kernel(d_x, x_ref, lbl_ref,
                 w1_ref, b1_ref,
                 w2_ref, b2_ref,
                 w3_ref, b3_ref,
                 w4_ref, b4_ref,
                 w5r_ref, b5_ref,
                 out_ref):
    f32 = jnp.float32
    tile_n, k_pad = x_ref.shape

    def leaky_relu(v):
        return jnp.where(v > 0, v, 0.2 * v)

    def dense(h, w_ref, b_ref):
        return (jnp.dot(h.astype(w_ref.dtype), w_ref[...],
                        preferred_element_type=f32)
                + b_ref[...].astype(f32))

    # Fused label embedding: merged W1 rows [d_x, d_x+nc) already contain
    # emb @ W1_emb, so a one-hot 1.0 at column (d_x + label) reproduces
    # emb[label] @ W1_emb.  Columns >= d_x of x arrive zero-padded; columns
    # beyond d_x+nc hit zero weight rows, so their values are irrelevant.
    col_ids = jax.lax.broadcasted_iota(jnp.int32, (tile_n, k_pad), 1)
    xin = jnp.where(col_ids == d_x + lbl_ref[...], 1.0, x_ref[...])

    h = leaky_relu(dense(xin, w1_ref, b1_ref))
    h = leaky_relu(dense(h, w2_ref, b2_ref))
    h = leaky_relu(dense(h, w3_ref, b3_ref))
    h = leaky_relu(dense(h, w4_ref, b4_ref))      # padded cols stay exactly 0

    # Final 64 -> 1 layer as a lane reduction against the padded (1, 128) w5
    # row (XLU); keeps the output block (tile_n, 1) so HBM writeback is tiny.
    logits = jnp.sum(h * w5r_ref[...].astype(f32), axis=-1, keepdims=True)
    logits = logits + b5_ref[...].astype(f32)
    sig = pl.reciprocal(1.0 + jnp.exp(-logits), approx=True)
    out_ref[...] = sig.astype(out_ref.dtype)


# ----------------------------------------------------------------------------
# Parameter construction (mimics nn.init.kaiming_normal_ * 0.1, zero biases,
# N(0,1) embedding, as in the PyTorch module).
# ----------------------------------------------------------------------------
def init_params(key, input_size=200, channels=1, num_classes=10):
    in_dim = channels * input_size + num_classes
    dims = [in_dim, 256, 256, 128, 64, 1]
    keys = jax.random.split(key, len(dims))

    emb = jax.random.normal(keys[0], (num_classes, num_classes), jnp.float32)
    ws, bs = [], []
    for i in range(5):
        fan_in, fan_out = dims[i], dims[i + 1]
        std = (2.0 / fan_in) ** 0.5              # kaiming_normal_, fan_in, gain=sqrt(2)
        w = jax.random.normal(keys[i + 1], (fan_in, fan_out), jnp.float32) * std * 0.1
        b = jnp.zeros((1, fan_out), jnp.float32)
        ws.append(w)
        bs.append(b)
    return {"emb": emb, "ws": ws, "bs": bs,
            "input_size": input_size, "channels": channels,
            "num_classes": num_classes}


def build_kernel_params(params, weight_dtype=WEIGHT_DTYPE):
    """Fold the embedding into a merged, lane-padded W1 and pad narrow dims."""
    nc = params["num_classes"]
    d_x = params["channels"] * params["input_size"]
    w1, w2, w3, w4, w5 = params["ws"]
    b1, b2, b3, b4, b5 = params["bs"]

    k_pad = _round_up(d_x + nc, _LANE)                     # 256 for the defaults
    # Merged W1: rows [0, d_x) are the flattened-input rows, rows [d_x, d_x+nc)
    # hold emb @ W1_emb, the remaining rows are zero.
    w1_merged = jnp.zeros((k_pad, w1.shape[1]), jnp.float32)
    w1_merged = w1_merged.at[:d_x].set(w1[:d_x])
    w1_merged = w1_merged.at[d_x:d_x + nc].set(params["emb"] @ w1[d_x:])

    w4p = _pad2d(w4, cols=_LANE)                           # (128, 128)
    b4p = _pad2d(b4, cols=_LANE)                           # (1, 128)
    w5row = _pad2d(w5.T, cols=_LANE)                       # (1, 128), lanes>=64 are 0

    cast = lambda a: a.astype(weight_dtype)
    f32 = lambda a: a.astype(jnp.float32)
    weights = [cast(w1_merged), f32(b1),
               cast(w2), f32(b2),
               cast(w3), f32(b3),
               cast(w4p), f32(b4p),
               cast(w5row), f32(b5)]
    return {"num_classes": nc, "d_x": d_x, "k_pad": k_pad, "weights": weights}


# ----------------------------------------------------------------------------
# Forward wrapper.
# ----------------------------------------------------------------------------
def _max_tile_rows():
    # v5e: single vector-store slot + f32 activations -> cap tiles at 256 rows
    # to avoid spill stores; otherwise allow 512-row tiles.
    try:
        kind = jax.devices()[0].device_kind.lower()
    except Exception:
        kind = ""
    if "v5 lite" in kind or "v5e" in kind or "v5lite" in kind:
        return 256
    return 512


def discriminator_forward(kparams, inputs, labels):
    n = inputs.shape[0]
    nc = kparams["num_classes"]
    d_x = kparams["d_x"]
    k_pad = kparams["k_pad"]

    x = inputs.reshape(n, -1).astype(jnp.float32)          # flatten(inputs, 1)
    assert x.shape[1] == d_x, (x.shape, d_x)

    # Batch tiling: 8-sublane multiples for tiny batches; for larger batches
    # use the biggest tile (<= 256/512 per chip) that still leaves >= 2 grid
    # steps, so the "parallel" axis can feed both v7x TensorCores.
    n_pad = _round_up(n, 8)
    if n_pad >= 128:
        n_pad = _round_up(n_pad, 128)
        tile_n = 128
        for cand in (512, 256):
            if cand <= _max_tile_rows() and n_pad % cand == 0 and n_pad // cand >= 2:
                tile_n = cand
                break
    else:
        tile_n = n_pad

    labels = labels.astype(jnp.int32)
    # Padded batch rows get label = nc -> one-hot lands on a zero weight row;
    # (their outputs are sliced off regardless).
    pad_label = nc if d_x + nc < k_pad else 0
    if n_pad != n:
        labels = jnp.pad(labels, (0, n_pad - n), constant_values=pad_label)
    labels2d = labels.reshape(n_pad, 1)

    # Lane-dense input block: pad columns up to k_pad (multiple of 128); the
    # one-hot label bit is written in-register by the kernel.
    x = jnp.pad(x, ((0, n_pad - n), (0, k_pad - d_x)))

    operands = [x, labels2d] + list(kparams["weights"])

    def batch_spec(width):
        return pl.BlockSpec((tile_n, width), lambda i: (i, 0))

    def const_spec(arr):   # weights stay VMEM-resident across batch tiles
        return pl.BlockSpec(arr.shape, lambda i: (0, 0))

    in_specs = ([batch_spec(k_pad), batch_spec(1)]
                + [const_spec(a) for a in operands[2:]])

    out = pl.pallas_call(
        functools.partial(_disc_kernel, d_x),
        out_shape=jax.ShapeDtypeStruct((n_pad, 1), jnp.float32),
        grid=(n_pad // tile_n,),
        in_specs=in_specs,
        out_specs=batch_spec(1),
        compiler_params=pltpu.CompilerParams(
            dimension_semantics=("parallel",)),
    )(*operands)

    return out[:n]


# ----------------------------------------------------------------------------
# Pure-JAX reference (straight port of the PyTorch forward), kept in f32.
# ----------------------------------------------------------------------------
def reference_forward(params, inputs, labels):
    n = inputs.shape[0]
    h = jnp.concatenate(
        [inputs.reshape(n, -1).astype(jnp.float32), params["emb"][labels]], axis=-1)
    for i in range(4):
        h = h @ params["ws"][i] + params["bs"][i]
        h = jnp.where(h > 0, h, 0.2 * h)
    h = h @ params["ws"][4] + params["bs"][4]
    return 1.0 / (1.0 + jnp.exp(-h))


if __name__ == "__main__":
    input_size, channels, num_classes = 200, 1, 10

    key = jax.random.PRNGKey(0)
    k_param, k_data = jax.random.split(key)

    params = init_params(k_param, input_size, channels, num_classes)
    kparams = build_kernel_params(params)

    # batch=8 exercises the small single-tile path; batch=1000 exercises the
    # large path (tile_n=512 where allowed, >=2 parallel grid steps, padded
    # batch rows).
    for batch in (8, 1000):
        kx, kl = jax.random.split(jax.random.fold_in(k_data, batch))
        inputs = jax.random.normal(kx, (batch, channels, input_size), jnp.float32)
        labels = jax.random.randint(kl, (batch,), 0, num_classes, dtype=jnp.int32)

        out = jax.block_until_ready(discriminator_forward(kparams, inputs, labels))
        ref = reference_forward(params, inputs, labels)
        assert out.shape == (batch, 1), out.shape
        # bf16 weights + approx reciprocal -> compare at 1e-2.
        assert jnp.allclose(out, ref, atol=1e-2, rtol=1e-2), \
            float(jnp.max(jnp.abs(out - ref)))

    print("KERNEL_OK")
</pallas_src>

<mosaic_0001>
module attributes {stable_mosaic.version = 11 : i64} {
  func.func @_disc_kernel(%arg0: i32, %arg1: memref<8x256xf32, #tpu.memory_space<vmem>>, %arg2: memref<8x1xi32, #tpu.memory_space<vmem>>, %arg3: memref<256x256xbf16, #tpu.memory_space<vmem>>, %arg4: memref<1x256xf32, #tpu.memory_space<vmem>>, %arg5: memref<256x256xbf16, #tpu.memory_space<vmem>>, %arg6: memref<1x256xf32, #tpu.memory_space<vmem>>, %arg7: memref<256x128xbf16, #tpu.memory_space<vmem>>, %arg8: memref<1x128xf32, #tpu.memory_space<vmem>>, %arg9: memref<128x128xbf16, #tpu.memory_space<vmem>>, %arg10: memref<1x128xf32, #tpu.memory_space<vmem>>, %arg11: memref<1x128xbf16, #tpu.memory_space<vmem>>, %arg12: memref<1x1xf32, #tpu.memory_space<vmem>>, %arg13: memref<8x1xf32, #tpu.memory_space<vmem>>) attributes {dimension_semantics = [#tpu.dimension_semantics<parallel>], iteration_bounds = array<i64: 1>, scalar_prefetch = 0 : i64, scratch_operands = 0 : i64, tpu.core_type = #tpu.core_type<tc>, window_params = [{transform_indices = @transform_0, window_bounds = array<i64: 8, 256>}, {transform_indices = @transform_1, window_bounds = array<i64: 8, 1>}, {pipeline_mode = #tpu.pipeline_mode<synchronous>, transform_indices = @transform_2, window_bounds = array<i64: 256, 256>}, {pipeline_mode = #tpu.pipeline_mode<synchronous>, transform_indices = @transform_3, window_bounds = array<i64: 1, 256>}, {pipeline_mode = #tpu.pipeline_mode<synchronous>, transform_indices = @transform_4, window_bounds = array<i64: 256, 256>}, {pipeline_mode = #tpu.pipeline_mode<synchronous>, transform_indices = @transform_5, window_bounds = array<i64: 1, 256>}, {pipeline_mode = #tpu.pipeline_mode<synchronous>, transform_indices = @transform_6, window_bounds = array<i64: 256, 128>}, {pipeline_mode = #tpu.pipeline_mode<synchronous>, transform_indices = @transform_7, window_bounds = array<i64: 1, 128>}, {pipeline_mode = #tpu.pipeline_mode<synchronous>, transform_indices = @transform_8, window_bounds = array<i64: 128, 128>}, {pipeline_mode = #tpu.pipeline_mode<synchronous>, transform_indices = @transform_9, window_bounds = array<i64: 1, 128>}, {pipeline_mode = #tpu.pipeline_mode<synchronous>, transform_indices = @transform_10, window_bounds = array<i64: 1, 128>}, {pipeline_mode = #tpu.pipeline_mode<synchronous>, transform_indices = @transform_11, window_bounds = array<i64: 1, 1>}, {transform_indices = @transform_12, window_bounds = array<i64: 8, 1>}]} {
    %0 = tpu.iota {dimensions = array<i32: 1>} : vector<8x256xi32>
    %c0 = arith.constant 0 : index
    %c0_0 = arith.constant 0 : index
    %1 = vector.load %arg2[%c0, %c0_0] : memref<8x1xi32, #tpu.memory_space<vmem>>, vector<8x1xi32>
    %c200_i32 = arith.constant 200 : i32
    %2 = vector.broadcast %c200_i32 : i32 to vector<8x1xi32>
    %3 = arith.addi %2, %1 : vector<8x1xi32>
    %4 = vector.broadcast %3 : vector<8x1xi32> to vector<8x256xi32>
    %5 = arith.cmpi eq, %0, %4 : vector<8x256xi32>
    %c0_1 = arith.constant 0 : index
    %c0_2 = arith.constant 0 : index
    %6 = vector.load %arg1[%c0_1, %c0_2] : memref<8x256xf32, #tpu.memory_space<vmem>>, vector<8x256xf32>
    %cst = arith.constant 1.000000e+00 : f32
    %7 = vector.broadcast %cst : f32 to vector<8x256xf32>
    %8 = arith.select %5, %7, %6 : vector<8x256xi1>, vector<8x256xf32>
    %9 = arith.truncf %8 : vector<8x256xf32> to vector<8x256xbf16>
    %c0_3 = arith.constant 0 : index
    %c0_4 = arith.constant 0 : index
    %10 = vector.load %arg3[%c0_3, %c0_4] : memref<256x256xbf16, #tpu.memory_space<vmem>>, vector<256x256xbf16>
    %cst_5 = arith.constant dense<0.000000e+00> : vector<8x256xf32>
    %11 = tpu.matmul %9, %10, %cst_5 {dimension_numbers = #tpu.dot_dimension_numbers<[1], [0], [0], [1], [0, 0, 1, 1], [], []>} : vector<8x256xbf16>, vector<256x256xbf16>, vector<8x256xf32> -> vector<8x256xf32>
    %c0_6 = arith.constant 0 : index
    %c0_7 = arith.constant 0 : index
    %12 = vector.load %arg4[%c0_6, %c0_7] : memref<1x256xf32, #tpu.memory_space<vmem>>, vector<1x256xf32>
    %13 = vector.broadcast %12 : vector<1x256xf32> to vector<8x256xf32>
    %14 = arith.addf %11, %13 : vector<8x256xf32>
    %cst_8 = arith.constant 0.000000e+00 : f32
    %15 = vector.broadcast %cst_8 : f32 to vector<8x256xf32>
    %16 = arith.cmpf ogt, %14, %15 : vector<8x256xf32>
    %cst_9 = arith.constant 2.000000e-01 : f32
    %17 = vector.broadcast %cst_9 : f32 to vector<8x256xf32>
    %18 = arith.mulf %17, %14 : vector<8x256xf32>
    %19 = arith.select %16, %14, %18 : vector<8x256xi1>, vector<8x256xf32>
    %20 = arith.truncf %19 : vector<8x256xf32> to vector<8x256xbf16>
    %c0_10 = arith.constant 0 : index
    %c0_11 = arith.constant 0 : index
    %21 = vector.load %arg5[%c0_10, %c0_11] : memref<256x256xbf16, #tpu.memory_space<vmem>>, vector<256x256xbf16>
    %cst_12 = arith.constant dense<0.000000e+00> : vector<8x256xf32>
    %22 = tpu.matmul %20, %21, %cst_12 {dimension_numbers = #tpu.dot_dimension_numbers<[1], [0], [0], [1], [0, 0, 1, 1], [], []>} : vector<8x256xbf16>, vector<256x256xbf16>, vector<8x256xf32> -> vector<8x256xf32>
    %c0_13 = arith.constant 0 : index
    %c0_14 = arith.constant 0 : index
    %23 = vector.load %arg6[%c0_13, %c0_14] : memref<1x256xf32, #tpu.memory_space<vmem>>, vector<1x256xf32>
    %24 = vector.broadcast %23 : vector<1x256xf32> to vector<8x256xf32>
    %25 = arith.addf %22, %24 : vector<8x256xf32>
    %cst_15 = arith.constant 0.000000e+00 : f32
    %26 = vector.broadcast %cst_15 : f32 to vector<8x256xf32>
    %27 = arith.cmpf ogt, %25, %26 : vector<8x256xf32>
    %cst_16 = arith.constant 2.000000e-01 : f32
    %28 = vector.broadcast %cst_16 : f32 to vector<8x256xf32>
    %29 = arith.mulf %28, %25 : vector<8x256xf32>
    %30 = arith.select %27, %25, %29 : vector<8x256xi1>, vector<8x256xf32>
    %31 = arith.truncf %30 : vector<8x256xf32> to vector<8x256xbf16>
    %c0_17 = arith.constant 0 : index
    %c0_18 = arith.constant 0 : index
    %32 = vector.load %arg7[%c0_17, %c0_18] : memref<256x128xbf16, #tpu.memory_space<vmem>>, vector<256x128xbf16>
    %cst_19 = arith.constant dense<0.000000e+00> : vector<8x128xf32>
    %33 = tpu.matmul %31, %32, %cst_19 {dimension_numbers = #tpu.dot_dimension_numbers<[1], [0], [0], [1], [0, 0, 1, 1], [], []>} : vector<8x256xbf16>, vector<256x128xbf16>, vector<8x128xf32> -> vector<8x128xf32>
    %c0_20 = arith.constant 0 : index
    %c0_21 = arith.constant 0 : index
    %34 = vector.load %arg8[%c0_20, %c0_21] : memref<1x128xf32, #tpu.memory_space<vmem>>, vector<1x128xf32>
    %35 = vector.broadcast %34 : vector<1x128xf32> to vector<8x128xf32>
    %36 = arith.addf %33, %35 : vector<8x128xf32>
    %cst_22 = arith.constant 0.000000e+00 : f32
    %37 = vector.broadcast %cst_22 : f32 to vector<8x128xf32>
    %38 = arith.cmpf ogt, %36, %37 : vector<8x128xf32>
    %cst_23 = arith.constant 2.000000e-01 : f32
    %39 = vector.broadcast %cst_23 : f32 to vector<8x128xf32>
    %40 = arith.mulf %39, %36 : vector<8x128xf32>
    %41 = arith.select %38, %36, %40 : vector<8x128xi1>, vector<8x128xf32>
    %42 = arith.truncf %41 : vector<8x128xf32> to vector<8x128xbf16>
    %c0_24 = arith.constant 0 : index
    %c0_25 = arith.constant 0 : index
    %43 = vector.load %arg9[%c0_24, %c0_25] : memref<128x128xbf16, #tpu.memory_space<vmem>>, vector<128x128xbf16>
    %cst_26 = arith.constant dense<0.000000e+00> : vector<8x128xf32>
    %44 = tpu.matmul %42, %43, %cst_26 {dimension_numbers = #tpu.dot_dimension_numbers<[1], [0], [0], [1], [0, 0, 1, 1], [], []>} : vector<8x128xbf16>, vector<128x128xbf16>, vector<8x128xf32> -> vector<8x128xf32>
    %c0_27 = arith.constant 0 : index
    %c0_28 = arith.constant 0 : index
    %45 = vector.load %arg10[%c0_27, %c0_28] : memref<1x128xf32, #tpu.memory_space<vmem>>, vector<1x128xf32>
    %46 = vector.broadcast %45 : vector<1x128xf32> to vector<8x128xf32>
    %47 = arith.addf %44, %46 : vector<8x128xf32>
    %cst_29 = arith.constant 0.000000e+00 : f32
    %48 = vector.broadcast %cst_29 : f32 to vector<8x128xf32>
    %49 = arith.cmpf ogt, %47, %48 : vector<8x128xf32>
    %cst_30 = arith.constant 2.000000e-01 : f32
    %50 = vector.broadcast %cst_30 : f32 to vector<8x128xf32>
    %51 = arith.mulf %50, %47 : vector<8x128xf32>
    %52 = arith.select %49, %47, %51 : vector<8x128xi1>, vector<8x128xf32>
    %c0_31 = arith.constant 0 : index
    %c0_32 = arith.constant 0 : index
    %53 = vector.load %arg11[%c0_31, %c0_32] : memref<1x128xbf16, #tpu.memory_space<vmem>>, vector<1x128xbf16>
    %54 = arith.extf %53 : vector<1x128xbf16> to vector<1x128xf32>
    %55 = vector.broadcast %54 : vector<1x128xf32> to vector<8x128xf32>
    %56 = arith.mulf %52, %55 : vector<8x128xf32>
    %cst_33 = arith.constant dense<0.000000e+00> : vector<8xf32>
    %57 = vector.multi_reduction <add>, %56, %cst_33 [1] : vector<8x128xf32> to vector<8xf32>
    %58 = vector.shape_cast %57 : vector<8xf32> to vector<8x1xf32>
    %c0_34 = arith.constant 0 : index
    %c0_35 = arith.constant 0 : index
    %59 = vector.load %arg12[%c0_34, %c0_35] : memref<1x1xf32, #tpu.memory_space<vmem>>, vector<1x1xf32>
    %60 = vector.broadcast %59 : vector<1x1xf32> to vector<8x1xf32>
    %61 = arith.addf %58, %60 : vector<8x1xf32>
    %cst_36 = arith.constant 0.000000e+00 : f32
    %62 = vector.broadcast %cst_36 : f32 to vector<8x1xf32>
    %63 = arith.subf %62, %61 : vector<8x1xf32>
    %64 = math.exp %63 : vector<8x1xf32>
    %cst_37 = arith.constant 1.000000e+00 : f32
    %65 = vector.broadcast %cst_37 : f32 to vector<8x1xf32>
    %66 = arith.addf %65, %64 : vector<8x1xf32>
    %67 = tpu.reciprocal %66 {approx = true} : vector<8x1xf32> -> vector<8x1xf32>
    %c0_38 = arith.constant 0 : index
    %c0_39 = arith.constant 0 : index
    %68 = vector.load %arg13[%c0_38, %c0_39] : memref<8x1xf32, #tpu.memory_space<vmem>>, vector<8x1xf32>
    tpu.vector_store %arg13[%c0_38, %c0_39], %67 {strides = array<i32>} : memref<8x1xf32, #tpu.memory_space<vmem>>, vector<8x1xf32>,
    return
  }
  func.func @transform_0(%arg0: i32) -> (i32, i32) {
    %c0_i32 = arith.constant 0 : i32
    %c0_i32_0 = arith.constant 0 : i32
    return %arg0, %c0_i32 : i32, i32
  }
  func.func @transform_1(%arg0: i32) -> (i32, i32) {
    %c0_i32 = arith.constant 0 : i32
    %c0_i32_0 = arith.constant 0 : i32
    return %arg0, %c0_i32 : i32, i32
  }
  func.func @transform_2(%arg0: i32) -> (i32, i32) {
    %c0_i32 = arith.constant 0 : i32
    %c0_i32_0 = arith.constant 0 : i32
    %c0_i32_1 = arith.constant 0 : i32
    return %c0_i32, %c0_i32_0 : i32, i32
  }
  func.func @transform_3(%arg0: i32) -> (i32, i32) {
    %c0_i32 = arith.constant 0 : i32
    %c0_i32_0 = arith.constant 0 : i32
    %c0_i32_1 = arith.constant 0 : i32
    return %c0_i32, %c0_i32_0 : i32, i32
  }
  func.func @transform_4(%arg0: i32) -> (i32, i32) {
    %c0_i32 = arith.constant 0 : i32
    %c0_i32_0 = arith.constant 0 : i32
    %c0_i32_1 = arith.constant 0 : i32
    return %c0_i32, %c0_i32_0 : i32, i32
  }
  func.func @transform_5(%arg0: i32) -> (i32, i32) {
    %c0_i32 = arith.constant 0 : i32
    %c0_i32_0 = arith.constant 0 : i32
    %c0_i32_1 = arith.constant 0 : i32
    return %c0_i32, %c0_i32_0 : i32, i32
  }
  func.func @transform_6(%arg0: i32) -> (i32, i32) {
    %c0_i32 = arith.constant 0 : i32
    %c0_i32_0 = arith.constant 0 : i32
    %c0_i32_1 = arith.constant 0 : i32
    return %c0_i32, %c0_i32_0 : i32, i32
  }
  func.func @transform_7(%arg0: i32) -> (i32, i32) {
    %c0_i32 = arith.constant 0 : i32
    %c0_i32_0 = arith.constant 0 : i32
    %c0_i32_1 = arith.constant 0 : i32
    return %c0_i32, %c0_i32_0 : i32, i32
  }
  func.func @transform_8(%arg0: i32) -> (i32, i32) {
    %c0_i32 = arith.constant 0 : i32
    %c0_i32_0 = arith.constant 0 : i32
    %c0_i32_1 = arith.constant 0 : i32
    return %c0_i32, %c0_i32_0 : i32, i32
  }
  func.func @transform_9(%arg0: i32) -> (i32, i32) {
    %c0_i32 = arith.constant 0 : i32
    %c0_i32_0 = arith.constant 0 : i32
    %c0_i32_1 = arith.constant 0 : i32
    return %c0_i32, %c0_i32_0 : i32, i32
  }
  func.func @transform_10(%arg0: i32) -> (i32, i32) {
    %c0_i32 = arith.constant 0 : i32
    %c0_i32_0 = arith.constant 0 : i32
    %c0_i32_1 = arith.constant 0 : i32
    return %c0_i32, %c0_i32_0 : i32, i32
  }
  func.func @transform_11(%arg0: i32) -> (i32, i32) {
    %c0_i32 = arith.constant 0 : i32
    %c0_i32_0 = arith.constant 0 : i32
    %c0_i32_1 = arith.constant 0 : i32
    return %c0_i32, %c0_i32_0 : i32, i32
  }
  func.func @transform_12(%arg0: i32) -> (i32, i32) {
    %c0_i32 = arith.constant 0 : i32
    %c0_i32_0 = arith.constant 0 : i32
    return %arg0, %c0_i32 : i32, i32
  }
}

</mosaic_0001>

<llo_original>
// kernel: tpu_custom_call.1
$region0: #{tpu_custom_call.1}
  #allocation0 [shape = 'u32[]', space=smem, size = 0x4, offset = 0x4, fixed_abs, tag = 'smem constant byte address 0x4 - core index']
  #allocation1 [shape = 'u32[144,128]{1,0:T(1,128)}', space=vmem, size = 0x12000, scoped, tag = 'internal scratch']
  #allocation2 [shape = 'f32[1,1]{1,0:T(1,128)S(1)}', space=vmem, size = 0x200, scoped, tag = 'scoped memory for tpu_custom_call.1']
  %s0 = inlined_call_operand.hbm [shape: f32[8,256], index: 0, kind: input, shape index: {}]
  %s1 = inlined_call_operand.vmem [shape: s32[8,1], index: 1, kind: input, shape index: {}]
  %s2 = inlined_call_operand.hbm [shape: bf16[256,256], index: 2, kind: input, shape index: {}]
  %s3 = inlined_call_operand.vmem [shape: f32[1,256], index: 3, kind: input, shape index: {}]
  %s4 = inlined_call_operand.hbm [shape: bf16[256,256], index: 4, kind: input, shape index: {}]
  %s5 = inlined_call_operand.vmem [shape: f32[1,256], index: 5, kind: input, shape index: {}]
  %s6 = inlined_call_operand.hbm [shape: bf16[256,128], index: 6, kind: input, shape index: {}]
  %s7 = inlined_call_operand.vmem [shape: f32[1,128], index: 7, kind: input, shape index: {}]
  %s8 = inlined_call_operand.hbm [shape: bf16[128,128], index: 8, kind: input, shape index: {}]
  %s9 = inlined_call_operand.vmem [shape: f32[1,128], index: 9, kind: input, shape index: {}]
  %s10 = inlined_call_operand.vmem [shape: bf16[1,128], index: 10, kind: input, shape index: {}]
  %s11 = inlined_call_operand.<no memory space> [shape: f32[1,1], index: 11, kind: input, shape index: {}]
  %s12 = inlined_call_operand.vmem [shape: f32[8,1], index: 12, kind: output, shape index: {}]
  %s13 = sld [smem:[#allocation0]]
  $region78: #{tpu_custom_call.1} parent=0
    _
  %s15 = ssub.s32 1, %s13
  %s16 = scalar_select 0, %s15, %s13
  %v17 = vstv %s11
  %18 = vst [vmem:[#allocation2] sm:$0x1] %v17
  $region1: #{tpu_custom_call.1} parent=0
    #allocation3 [shape = 'u8[8192]{0}', space=vmem, size = 0x2000, scoped, tag = 'input window, operand 0, single buffered']
    #allocation4 [shape = 's32[1]{0}', space=sflag, size = 0x4, scoped, tag = 'scoped memory for tpu_custom_call.1']
    #allocation5 [shape = 'u8[131072]{0}', space=vmem, size = 0x20000, scoped, tag = 'input window, operand 2, single buffered']
    #allocation6 [shape = 's32[1]{0}', space=sflag, size = 0x4, scoped, tag = 'scoped memory for tpu_custom_call.1']
    #allocation7 [shape = 'u8[131072]{0}', space=vmem, size = 0x20000, scoped, tag = 'input window, operand 4, single buffered']
    #allocation8 [shape = 'u8[65536]{0}', space=vmem, size = 0x10000, scoped, tag = 'input window, operand 6, single buffered']
    #allocation9 [shape = 's32[1]{0}', space=sflag, size = 0x4, scoped, tag = 'scoped memory for tpu_custom_call.1']
    #allocation10 [shape = 'u8[32768]{0}', space=vmem, size = 0x8000, scoped, tag = 'input window, operand 8, single buffered']
    %19 = vsyncpa [#allocation4], 0
    %20 = vsyncpa [#allocation6], 0
    %21 = vsyncpa [#allocation9], 0
    // Predicated region
    $region2: #{tpu_custom_call.1} parent=1 // pred_check
      _
    $region3: #{tpu_custom_call.1} parent=1 // pred_check_branch
      %23 = sbr.rel (0) target = $region5
    $region4: #{tpu_custom_call.1} parent=1 // pred_region
      %s25 = ssub.s32 256, 256
      %26 = vsyncadd [#allocation4], %s25
      %s28 = sshll.u32 [#allocation3], 4
      %s29 = int_to_ptr.vmem [resolvable:$true] %s28
      %31 = dma.hbm_to_vmem [thread:$0]  %s0, 256, %s29, [#allocation4]
    $region5: #{tpu_custom_call.1} parent=1 // pred_fallthru
      _
    // Predicated region
    $region6: #{tpu_custom_call.1} parent=1 // pred_check
      _
    $region7: #{tpu_custom_call.1} parent=1 // pred_check_branch
      %33 = sbr.rel (0) target = $region9
    $region8: #{tpu_custom_call.1} parent=1 // pred_region
      _
    $region9: #{tpu_custom_call.1} parent=1 // pred_fallthru
      _
    // Predicated region
    $region10: #{tpu_custom_call.1} parent=1 // pred_check
      _
    $region11: #{tpu_custom_call.1} parent=1 // pred_check_branch
      %35 = sbr.rel (0) target = $region13
    $region12: #{tpu_custom_call.1} parent=1 // pred_region
      %s37 = ssub.s32 4096, 4096
      %38 = vsyncadd [#allocation6], %s37
      %s39 = sshll.u32 [#allocation5], 4
      %s40 = int_to_ptr.vmem [resolvable:$true] %s39
      %45 = dma.hbm_to_vmem [thread:$0]  %s2, 4096, %s40, [#allocation6], 128, 128, 8
    $region13: #{tpu_custom_call.1} parent=1 // pred_fallthru
      _
    // Predicated region
    $region14: #{tpu_custom_call.1} parent=1 // pred_check
      _
    $region15: #{tpu_custom_call.1} parent=1 // pred_check_branch
      %47 = sbr.rel (0) target = $region17
    $region16: #{tpu_custom_call.1} parent=1 // pred_region
      _
    $region17: #{tpu_custom_call.1} parent=1 // pred_fallthru
      _
    // Predicated region
    $region18: #{tpu_custom_call.1} parent=1 // pred_check
      _
    $region19: #{tpu_custom_call.1} parent=1 // pred_check_branch
      %49 = sbr.rel (0) target = $region21
    $region20: #{tpu_custom_call.1} parent=1 // pred_region
      %s51 = ssub.s32 4096, 4096
      %52 = vsyncadd [#allocation6], %s51
      %s53 = sshll.u32 [#allocation7], 4
      %s54 = int_to_ptr.vmem [resolvable:$true] %s53
      %59 = dma.hbm_to_vmem [thread:$0]  %s4, 4096, %s54, [#allocation6], 128, 128, 8
    $region21: #{tpu_custom_call.1} parent=1 // pred_fallthru
      _
    // Predicated region
    $region22: #{tpu_custom_call.1} parent=1 // pred_check
      _
    $region23: #{tpu_custom_call.1} parent=1 // pred_check_branch
      %61 = sbr.rel (0) target = $region25
    $region24: #{tpu_custom_call.1} parent=1 // pred_region
      _
    $region25: #{tpu_custom_call.1} parent=1 // pred_fallthru
      _
    // Predicated region
    $region26: #{tpu_custom_call.1} parent=1 // pred_check
      _
    $region27: #{tpu_custom_call.1} parent=1 // pred_check_branch
      %63 = sbr.rel (0) target = $region29
    $region28: #{tpu_custom_call.1} parent=1 // pred_region
      %s65 = ssub.s32 2048, 2048
      %66 = vsyncadd [#allocation9], %s65
      %s67 = sshll.u32 [#allocation8], 4
      %s68 = int_to_ptr.vmem [resolvable:$true] %s67
      %73 = dma.hbm_to_vmem [thread:$0]  %s6, 2048, %s68, [#allocation9], 64, 64, 4
    $region29: #{tpu_custom_call.1} parent=1 // pred_fallthru
      _
    // Predicated region
    $region30: #{tpu_custom_call.1} parent=1 // pred_check
      _
    $region31: #{tpu_custom_call.1} parent=1 // pred_check_branch
      %75 = sbr.rel (0) target = $region33
    $region32: #{tpu_custom_call.1} parent=1 // pred_region
      _
    $region33: #{tpu_custom_call.1} parent=1 // pred_fallthru
      _
    // Predicated region
    $region34: #{tpu_custom_call.1} parent=1 // pred_check
      _
    $region35: #{tpu_custom_call.1} parent=1 // pred_check_branch
      %77 = sbr.rel (0) target = $region37
    $region36: #{tpu_custom_call.1} parent=1 // pred_region
      %s79 = ssub.s32 1024, 1024
      %80 = vsyncadd [#allocation9], %s79
      %s81 = sshll.u32 [#allocation10], 4
      %s82 = int_to_ptr.vmem [resolvable:$true] %s81
      %87 = dma.hbm_to_vmem [thread:$0]  %s8, 1024, %s82, [#allocation9], 64, 64, 4
    $region37: #{tpu_custom_call.1} parent=1 // pred_fallthru
      _
    // Predicated region
    $region38: #{tpu_custom_call.1} parent=1 // pred_check
      _
    $region39: #{tpu_custom_call.1} parent=1 // pred_check_branch
      %89 = sbr.rel (0) target = $region41
    $region40: #{tpu_custom_call.1} parent=1 // pred_region
      _
    $region41: #{tpu_custom_call.1} parent=1 // pred_fallthru
      _
    // Predicated region
    $region42: #{tpu_custom_call.1} parent=1 // pred_check
      _
    $region43: #{tpu_custom_call.1} parent=1 // pred_check_branch
      %91 = sbr.rel (0) target = $region45
    $region44: #{tpu_custom_call.1} parent=1 // pred_region
      _
    $region45: #{tpu_custom_call.1} parent=1 // pred_fallthru
      _
    // Predicated region
    $region46: #{tpu_custom_call.1} parent=1 // pred_check
      _
    $region47: #{tpu_custom_call.1} parent=1 // pred_check_branch
      %93 = sbr.rel (0) target = $region49
    $region48: #{tpu_custom_call.1} parent=1 // pred_region
      _
    $region49: #{tpu_custom_call.1} parent=1 // pred_fallthru
      _
    // Predicated region
    $region50: #{tpu_custom_call.1} parent=1 // pred_check
      _
    $region51: #{tpu_custom_call.1} parent=1 // pred_check_branch
      %95 = sbr.rel (0) target = $region53
    $region52: #{tpu_custom_call.1} parent=1 // pred_region
      %96 = dma.done [#allocation4], 256
    $region53: #{tpu_custom_call.1} parent=1 // pred_fallthru
      _
    // Predicated region
    $region54: #{tpu_custom_call.1} parent=1 // pred_check
      _
    $region55: #{tpu_custom_call.1} parent=1 // pred_check_branch
      %98 = sbr.rel (0) target = $region57
    $region56: #{tpu_custom_call.1} parent=1 // pred_region
      %99 = dma.done [#allocation6], 4096
    $region57: #{tpu_custom_call.1} parent=1 // pred_fallthru
      _
    // Predicated region
    $region58: #{tpu_custom_call.1} parent=1 // pred_check
      _
    $region59: #{tpu_custom_call.1} parent=1 // pred_check_branch
      %101 = sbr.rel (0) target = $region61
    $region60: #{tpu_custom_call.1} parent=1 // pred_region
      %102 = dma.done [#allocation6], 4096
    $region61: #{tpu_custom_call.1} parent=1 // pred_fallthru
      _
    // Predicated region
    $region62: #{tpu_custom_call.1} parent=1 // pred_check
      _
    $region63: #{tpu_custom_call.1} parent=1 // pred_check_branch
      %104 = sbr.rel (0) target = $region65
    $region64: #{tpu_custom_call.1} parent=1 // pred_region
      %105 = dma.done [#allocation9], 2048
    $region65: #{tpu_custom_call.1} parent=1 // pred_fallthru
      _
    // Predicated region
    $region66: #{tpu_custom_call.1} parent=1 // pred_check
      _
    $region67: #{tpu_custom_call.1} parent=1 // pred_check_branch
      %107 = sbr.rel (0) target = $region69
    $region68: #{tpu_custom_call.1} parent=1 // pred_region
      %108 = dma.done [#allocation9], 1024
    $region69: #{tpu_custom_call.1} parent=1 // pred_fallthru
      _
    %v110 = vlaneseq
    %v111 = vand.u32 %v110, 127
    %v112 = vadd.s32 %v111, 128
    %v113 = vld [vmem:[%s1] sm:$0xff]
    %v114 = vadd.s32 %v113, 200
    %115 = vset.pattern.permute.xlu0 0
    %116 = vperm.xlu0 %115, %v114
    %v117 = vpop.permute.xlu0 %116
    %vm118 = vcmp.eq.s32.totalorder %v111, %v117
    %vm119 = vcmp.eq.s32.totalorder %v112, %v117
    %v120 = vld [vmem:[#allocation3] sm:$0xff]
    %v121 = vld [vmem:[#allocation3 + $0x8] sm:$0xff]
    %v122 = vsel %vm118, 1.0, %v120
    %v123 = vsel %vm119, 1.0, %v121
    %v124 = vpack.c.bf16 %v122, %v122
    %v125 = vpack.c.bf16 %v123, %v123
    %v126 = vld [vmem:[#allocation5] sm:$0xff]
    %v127 = vld [vmem:[#allocation5 + $0x8] sm:$0xff]
    %v128 = vld [vmem:[#allocation5 + $0x10] sm:$0xff]
    %v129 = vld [vmem:[#allocation5 + $0x18] sm:$0xff]
    %v130 = vld [vmem:[#allocation5 + $0x20] sm:$0xff]
    %v131 = vld [vmem:[#allocation5 + $0x28] sm:$0xff]
    %v132 = vld [vmem:[#allocation5 + $0x30] sm:$0xff]
    %v133 = vld [vmem:[#allocation5 + $0x38] sm:$0xff]
    %v134 = vld [vmem:[#allocation5 + $0x40] sm:$0xff]
    %v135 = vld [vmem:[#allocation5 + $0x48] sm:$0xff]
    %v136 = vld [vmem:[#allocation5 + $0x50] sm:$0xff]
    %v137 = vld [vmem:[#allocation5 + $0x58] sm:$0xff]
    %v138 = vld [vmem:[#allocation5 + $0x60] sm:$0xff]
    %v139 = vld [vmem:[#allocation5 + $0x68] sm:$0xff]
    %v140 = vld [vmem:[#allocation5 + $0x70] sm:$0xff]
    %v141 = vld [vmem:[#allocation5 + $0x78] sm:$0xff]
    %v142 = vld [vmem:[#allocation5 + $0x80] sm:$0xff]
    %v143 = vld [vmem:[#allocation5 + $0x88] sm:$0xff]
    %v144 = vld [vmem:[#allocation5 + $0x90] sm:$0xff]
    %v145 = vld [vmem:[#allocation5 + $0x98] sm:$0xff]
    %v146 = vld [vmem:[#allocation5 + $0xa0] sm:$0xff]
    %v147 = vld [vmem:[#allocation5 + $0xa8] sm:$0xff]
    %v148 = vld [vmem:[#allocation5 + $0xb0] sm:$0xff]
    %v149 = vld [vmem:[#allocation5 + $0xb8] sm:$0xff]
    %v150 = vld [vmem:[#allocation5 + $0xc0] sm:$0xff]
    %v151 = vld [vmem:[#allocation5 + $0xc8] sm:$0xff]
    %v152 = vld [vmem:[#allocation5 + $0xd0] sm:$0xff]
    %v153 = vld [vmem:[#allocation5 + $0xd8] sm:$0xff]
    %v154 = vld [vmem:[#allocation5 + $0xe0] sm:$0xff]
    %v155 = vld [vmem:[#allocation5 + $0xe8] sm:$0xff]
    %v156 = vld [vmem:[#allocation5 + $0xf0] sm:$0xff]
    %v157 = vld [vmem:[#allocation5 + $0xf8] sm:$0xff]
    %v158 = vld [vmem:[%s3] sm:$0x3]
    %v160 = vlaneseq
    %v161 = vshrl.u32 %v160, 7
    %v162 = vsub.s32 0, %v161
    %v163 = vrot.slane %v158, %v162
    %v164 = vlaneseq
    %v165 = vshrl.u32 %v164, 7
    %v166 = vsub.s32 1, %v165
    %v167 = vrot.slane %v158, %v166
    %v202 = vunpack.c.l.b16 %v126
    %v203 = vunpack.c.h.b16 %v126
    %v204 = vunpack.c.l.b16 %v127
    %v205 = vunpack.c.h.b16 %v127
    %v206 = vunpack.c.l.b16 %v128
    %v207 = vunpack.c.h.b16 %v128
    %v208 = vunpack.c.l.b16 %v129
    %v209 = vunpack.c.h.b16 %v129
    %v210 = vunpack.c.l.b16 %v130
    %v211 = vunpack.c.h.b16 %v130
    %v212 = vunpack.c.l.b16 %v131
    %v213 = vunpack.c.h.b16 %v131
    %v214 = vunpack.c.l.b16 %v132
    %v215 = vunpack.c.h.b16 %v132
    %v216 = vunpack.c.l.b16 %v133
    %v217 = vunpack.c.h.b16 %v133
    %v218 = vunpack.c.l.b16 %v134
    %v219 = vunpack.c.h.b16 %v134
    %v220 = vunpack.c.l.b16 %v135
    %v221 = vunpack.c.h.b16 %v135
    %v222 = vunpack.c.l.b16 %v136
    %v223 = vunpack.c.h.b16 %v136
    %v224 = vunpack.c.l.b16 %v137
    %v225 = vunpack.c.h.b16 %v137
    %v226 = vunpack.c.l.b16 %v138
    %v227 = vunpack.c.h.b16 %v138
    %v228 = vunpack.c.l.b16 %v139
    %v229 = vunpack.c.h.b16 %v139
    %v230 = vunpack.c.l.b16 %v140
    %v231 = vunpack.c.h.b16 %v140
    %v232 = vunpack.c.l.b16 %v141
    %v233 = vunpack.c.h.b16 %v141
    %v234 = vunpack.c.l.b16 %v142
    %v235 = vunpack.c.h.b16 %v142
    %v236 = vunpack.c.l.b16 %v143
    %v237 = vunpack.c.h.b16 %v143
    %v238 = vunpack.c.l.b16 %v144
    %v239 = vunpack.c.h.b16 %v144
    %v240 = vunpack.c.l.b16 %v145
    %v241 = vunpack.c.h.b16 %v145
    %v242 = vunpack.c.l.b16 %v146
    %v243 = vunpack.c.h.b16 %v146
    %v244 = vunpack.c.l.b16 %v147
    %v245 = vunpack.c.h.b16 %v147
    %v246 = vunpack.c.l.b16 %v148
    %v247 = vunpack.c.h.b16 %v148
    %v248 = vunpack.c.l.b16 %v149
    %v249 = vunpack.c.h.b16 %v149
    %v250 = vunpack.c.l.b16 %v150
    %v251 = vunpack.c.h.b16 %v150
    %v252 = vunpack.c.l.b16 %v151
    %v253 = vunpack.c.h.b16 %v151
    %v254 = vunpack.c.l.b16 %v152
    %v255 = vunpack.c.h.b16 %v152
    %v256 = vunpack.c.l.b16 %v153
    %v257 = vunpack.c.h.b16 %v153
    %v258 = vunpack.c.l.b16 %v154
    %v259 = vunpack.c.h.b16 %v154
    %v260 = vunpack.c.l.b16 %v155
    %v261 = vunpack.c.h.b16 %v155
    %v262 = vunpack.c.l.b16 %v156
    %v263 = vunpack.c.h.b16 %v156
    %v264 = vunpack.c.l.b16 %v157
    %v265 = vunpack.c.h.b16 %v157
    %v266 = vpack.c.b16 %v204, %v202
    %v267 = vpack.c.b16 %v205, %v203
    %v268 = vpack.c.b16 %v208, %v206
    %v269 = vpack.c.b16 %v209, %v207
    %v270 = vpack.c.b16 %v212, %v210
    %v271 = vpack.c.b16 %v213, %v211
    %v272 = vpack.c.b16 %v216, %v214
    %v273 = vpack.c.b16 %v217, %v215
    %v274 = vpack.c.b16 %v220, %v218
    %v275 = vpack.c.b16 %v221, %v219
    %v276 = vpack.c.b16 %v224, %v222
    %v277 = vpack.c.b16 %v225, %v223
    %v278 = vpack.c.b16 %v228, %v226
    %v279 = vpack.c.b16 %v229, %v227
    %v280 = vpack.c.b16 %v232, %v230
    %v281 = vpack.c.b16 %v233, %v231
    %v282 = vpack.c.b16 %v236, %v234
    %v283 = vpack.c.b16 %v237, %v235
    %v284 = vpack.c.b16 %v240, %v238
    %v285 = vpack.c.b16 %v241, %v239
    %v286 = vpack.c.b16 %v244, %v242
    %v287 = vpack.c.b16 %v245, %v243
    %v288 = vpack.c.b16 %v248, %v246
    %v289 = vpack.c.b16 %v249, %v247
    %v290 = vpack.c.b16 %v252, %v250
    %v291 = vpack.c.b16 %v253, %v251
    %v292 = vpack.c.b16 %v256, %v254
    %v293 = vpack.c.b16 %v257, %v255
    %v294 = vpack.c.b16 %v260, %v258
    %v295 = vpack.c.b16 %v261, %v259
    %v296 = vpack.c.b16 %v264, %v262
    %v297 = vpack.c.b16 %v265, %v263
    %330 = vmatprep.subr.bf16.mxu0 %v267
    %331 = vmatpush1.bf16.msra.mxu0 %v266
    %332 = vmatprep.subr.bf16.mxu0 %v269
    %333 = vmatpush1.bf16.msra.mxu0 %v268
    %334 = vmatprep.subr.bf16.mxu0 %v271
    %335 = vmatpush1.bf16.msra.mxu0 %v270
    %336 = vmatprep.subr.bf16.mxu0 %v273
    %337 = vmatpush1.bf16.msra.mxu0 %v272
    %338 = vmatprep.subr.bf16.mxu0 %v275
    %339 = vmatpush1.bf16.msra.mxu0 %v274
    %340 = vmatprep.subr.bf16.mxu0 %v277
    %341 = vmatpush1.bf16.msra.mxu0 %v276
    %342 = vmatprep.subr.bf16.mxu0 %v279
    %343 = vmatpush1.bf16.msra.mxu0 %v278
    %344 = vmatprep.subr.bf16.mxu0 %v281
    %345 = vmatpush1.bf16.msra.mxu0 %v280
    %346 = vmatprep.subr.bf16.mxu0 %v283
    %347 = vmatpush1.bf16.msra.mxu0 %v282
    %348 = vmatprep.subr.bf16.mxu0 %v285
    %349 = vmatpush1.bf16.msra.mxu0 %v284
    %350 = vmatprep.subr.bf16.mxu0 %v287
    %351 = vmatpush1.bf16.msra.mxu0 %v286
    %352 = vmatprep.subr.bf16.mxu0 %v289
    %353 = vmatpush1.bf16.msra.mxu0 %v288
    %354 = vmatprep.subr.bf16.mxu0 %v291
    %355 = vmatpush1.bf16.msra.mxu0 %v290
    %356 = vmatprep.subr.bf16.mxu0 %v293
    %357 = vmatpush1.bf16.msra.mxu0 %v292
    %358 = vmatprep.subr.bf16.mxu0 %v295
    %359 = vmatpush1.bf16.msra.mxu0 %v294
    %360 = vmatprep.subr.bf16.mxu0 %v297
    %361 = vmatpush1.bf16.msra.mxu0 %v296
    %362 = vmatprep.mubr.bf16.mxu0 %v125
    %363 = vmatmul.mubr.bf16.gmra.mrb[0].mxu0 %v124
    %v364 = vpop.f32.mrb[0].mxu0
    %v365 = vadd.f32 %v163, %v364
    %v366 = vpop.f32.mrb[0].mxu0
    %v367 = vadd.f32 %v167, %v366
    %v368 = vpop.f32.mrb[0].mxu0
    %v369 = vpop.f32.mrb[0].mxu0
    %370 = vdwg.mxu0
    %vm371 = vcmp.gt.f32.partialorder %v365, 0.0
    %vm372 = vcmp.gt.f32.partialorder %v367, 0.0
    %v373 = vmul.f32 %v365, 0.2
    %v374 = vmul.f32 %v367, 0.2
    %v375 = vsel %vm371, %v365, %v373
    %v376 = vsel %vm372, %v367, %v374
    %v377 = vpack.c.bf16 %v375, %v375
    %v378 = vpack.c.bf16 %v376, %v376
    %v379 = vld [vmem:[#allocation7] sm:$0xff]
    %v380 = vld [vmem:[#allocation7 + $0x8] sm:$0xff]
    %v381 = vld [vmem:[#allocation7 + $0x10] sm:$0xff]
    %v382 = vld [vmem:[#allocation7 + $0x18] sm:$0xff]
    %v383 = vld [vmem:[#allocation7 + $0x20] sm:$0xff]
    %v384 = vld [vmem:[#allocation7 + $0x28] sm:$0xff]
    %v385 = vld [vmem:[#allocation7 + $0x30] sm:$0xff]
    %v386 = vld [vmem:[#allocation7 + $0x38] sm:$0xff]
    %v387 = vld [vmem:[#allocation7 + $0x40] sm:$0xff]
    %v388 = vld [vmem:[#allocation7 + $0x48] sm:$0xff]
    %v389 = vld [vmem:[#allocation7 + $0x50] sm:$0xff]
    %v390 = vld [vmem:[#allocation7 + $0x58] sm:$0xff]
    %v391 = vld [vmem:[#allocation7 + $0x60] sm:$0xff]
    %v392 = vld [vmem:[#allocation7 + $0x68] sm:$0xff]
    %v393 = vld [vmem:[#allocation7 + $0x70] sm:$0xff]
    %v394 = vld [vmem:[#allocation7 + $0x78] sm:$0xff]
    %v395 = vld [vmem:[#allocation7 + $0x80] sm:$0xff]
    %v396 = vld [vmem:[#allocation7 + $0x88] sm:$0xff]
    %v397 = vld [vmem:[#allocation7 + $0x90] sm:$0xff]
    %v398 = vld [vmem:[#allocation7 + $0x98] sm:$0xff]
    %v399 = vld [vmem:[#allocation7 + $0xa0] sm:$0xff]
    %v400 = vld [vmem:[#allocation7 + $0xa8] sm:$0xff]
    %v401 = vld [vmem:[#allocation7 + $0xb0] sm:$0xff]
    %v402 = vld [vmem:[#allocation7 + $0xb8] sm:$0xff]
    %v403 = vld [vmem:[#allocation7 + $0xc0] sm:$0xff]
    %v404 = vld [vmem:[#allocation7 + $0xc8] sm:$0xff]
    %v405 = vld [vmem:[#allocation7 + $0xd0] sm:$0xff]
    %v406 = vld [vmem:[#allocation7 + $0xd8] sm:$0xff]
    %v407 = vld [vmem:[#allocation7 + $0xe0] sm:$0xff]
    %v408 = vld [vmem:[#allocation7 + $0xe8] sm:$0xff]
    %v409 = vld [vmem:[#allocation7 + $0xf0] sm:$0xff]
    %v410 = vld [vmem:[#allocation7 + $0xf8] sm:$0xff]
    %v411 = vld [vmem:[%s5] sm:$0x3]
    %v413 = vlaneseq
    %v414 = vshrl.u32 %v413, 7
    %v415 = vsub.s32 0, %v414
    %v416 = vrot.slane %v411, %v415
    %v417 = vlaneseq
    %v418 = vshrl.u32 %v417, 7
    %v419 = vsub.s32 1, %v418
    %v420 = vrot.slane %v411, %v419
    %v455 = vunpack.c.l.b16 %v379
    %v456 = vunpack.c.h.b16 %v379
    %v457 = vunpack.c.l.b16 %v380
    %v458 = vunpack.c.h.b16 %v380
    %v459 = vunpack.c.l.b16 %v381
    %v460 = vunpack.c.h.b16 %v381
    %v461 = vunpack.c.l.b16 %v382
    %v462 = vunpack.c.h.b16 %v382
    %v463 = vunpack.c.l.b16 %v383
    %v464 = vunpack.c.h.b16 %v383
    %v465 = vunpack.c.l.b16 %v384
    %v466 = vunpack.c.h.b16 %v384
    %v467 = vunpack.c.l.b16 %v385
    %v468 = vunpack.c.h.b16 %v385
    %v469 = vunpack.c.l.b16 %v386
    %v470 = vunpack.c.h.b16 %v386
    %v471 = vunpack.c.l.b16 %v387
    %v472 = vunpack.c.h.b16 %v387
    %v473 = vunpack.c.l.b16 %v388
    %v474 = vunpack.c.h.b16 %v388
    %v475 = vunpack.c.l.b16 %v389
    %v476 = vunpack.c.h.b16 %v389
    %v477 = vunpack.c.l.b16 %v390
    %v478 = vunpack.c.h.b16 %v390
    %v479 = vunpack.c.l.b16 %v391
    %v480 = vunpack.c.h.b16 %v391
    %v481 = vunpack.c.l.b16 %v392
    %v482 = vunpack.c.h.b16 %v392
    %v483 = vunpack.c.l.b16 %v393
    %v484 = vunpack.c.h.b16 %v393
    %v485 = vunpack.c.l.b16 %v394
    %v486 = vunpack.c.h.b16 %v394
    %v487 = vunpack.c.l.b16 %v395
    %v488 = vunpack.c.h.b16 %v395
    %v489 = vunpack.c.l.b16 %v396
    %v490 = vunpack.c.h.b16 %v396
    %v491 = vunpack.c.l.b16 %v397
    %v492 = vunpack.c.h.b16 %v397
    %v493 = vunpack.c.l.b16 %v398
    %v494 = vunpack.c.h.b16 %v398
    %v495 = vunpack.c.l.b16 %v399
    %v496 = vunpack.c.h.b16 %v399
    %v497 = vunpack.c.l.b16 %v400
    %v498 = vunpack.c.h.b16 %v400
    %v499 = vunpack.c.l.b16 %v401
    %v500 = vunpack.c.h.b16 %v401
    %v501 = vunpack.c.l.b16 %v402
    %v502 = vunpack.c.h.b16 %v402
    %v503 = vunpack.c.l.b16 %v403
    %v504 = vunpack.c.h.b16 %v403
    %v505 = vunpack.c.l.b16 %v404
    %v506 = vunpack.c.h.b16 %v404
    %v507 = vunpack.c.l.b16 %v405
    %v508 = vunpack.c.h.b16 %v405
    %v509 = vunpack.c.l.b16 %v406
    %v510 = vunpack.c.h.b16 %v406
    %v511 = vunpack.c.l.b16 %v407
    %v512 = vunpack.c.h.b16 %v407
    %v513 = vunpack.c.l.b16 %v408
    %v514 = vunpack.c.h.b16 %v408
    %v515 = vunpack.c.l.b16 %v409
    %v516 = vunpack.c.h.b16 %v409
    %v517 = vunpack.c.l.b16 %v410
    %v518 = vunpack.c.h.b16 %v410
    %v519 = vpack.c.b16 %v457, %v455
    %v520 = vpack.c.b16 %v458, %v456
    %v521 = vpack.c.b16 %v461, %v459
    %v522 = vpack.c.b16 %v462, %v460
    %v523 = vpack.c.b16 %v465, %v463
    %v524 = vpack.c.b16 %v466, %v464
    %v525 = vpack.c.b16 %v469, %v467
    %v526 = vpack.c.b16 %v470, %v468
    %v527 = vpack.c.b16 %v473, %v471
    %v528 = vpack.c.b16 %v474, %v472
    %v529 = vpack.c.b16 %v477, %v475
    %v530 = vpack.c.b16 %v478, %v476
    %v531 = vpack.c.b16 %v481, %v479
    %v532 = vpack.c.b16 %v482, %v480
    %v533 = vpack.c.b16 %v485, %v483
    %v534 = vpack.c.b16 %v486, %v484
    %v535 = vpack.c.b16 %v489, %v487
    %v536 = vpack.c.b16 %v490, %v488
    %v537 = vpack.c.b16 %v493, %v491
    %v538 = vpack.c.b16 %v494, %v492
    %v539 = vpack.c.b16 %v497, %v495
    %v540 = vpack.c.b16 %v498, %v496
    %v541 = vpack.c.b16 %v501, %v499
    %v542 = vpack.c.b16 %v502, %v500
    %v543 = vpack.c.b16 %v505, %v503
    %v544 = vpack.c.b16 %v506, %v504
    %v545 = vpack.c.b16 %v509, %v507
    %v546 = vpack.c.b16 %v510, %v508
    %v547 = vpack.c.b16 %v513, %v511
    %v548 = vpack.c.b16 %v514, %v512
    %v549 = vpack.c.b16 %v517, %v515
    %v550 = vpack.c.b16 %v518, %v516
    %583 = vmatprep.subr.bf16.mxu0 %v520
    %584 = vmatpush1.bf16.msra.mxu0 %v519
    %585 = vmatprep.subr.bf16.mxu0 %v522
    %586 = vmatpush1.bf16.msra.mxu0 %v521
    %587 = vmatprep.subr.bf16.mxu0 %v524
    %588 = vmatpush1.bf16.msra.mxu0 %v523
    %589 = vmatprep.subr.bf16.mxu0 %v526
    %590 = vmatpush1.bf16.msra.mxu0 %v525
    %591 = vmatprep.subr.bf16.mxu0 %v528
    %592 = vmatpush1.bf16.msra.mxu0 %v527
    %593 = vmatprep.subr.bf16.mxu0 %v530
    %594 = vmatpush1.bf16.msra.mxu0 %v529
    %595 = vmatprep.subr.bf16.mxu0 %v532
    %596 = vmatpush1.bf16.msra.mxu0 %v531
    %597 = vmatprep.subr.bf16.mxu0 %v534
    %598 = vmatpush1.bf16.msra.mxu0 %v533
    %599 = vmatprep.subr.bf16.mxu0 %v536
    %600 = vmatpush1.bf16.msra.mxu0 %v535
    %601 = vmatprep.subr.bf16.mxu0 %v538
    %602 = vmatpush1.bf16.msra.mxu0 %v537
    %603 = vmatprep.subr.bf16.mxu0 %v540
    %604 = vmatpush1.bf16.msra.mxu0 %v539
    %605 = vmatprep.subr.bf16.mxu0 %v542
    %606 = vmatpush1.bf16.msra.mxu0 %v541
    %607 = vmatprep.subr.bf16.mxu0 %v544
    %608 = vmatpush1.bf16.msra.mxu0 %v543
    %609 = vmatprep.subr.bf16.mxu0 %v546
    %610 = vmatpush1.bf16.msra.mxu0 %v545
    %611 = vmatprep.subr.bf16.mxu0 %v548
    %612 = vmatpush1.bf16.msra.mxu0 %v547
    %613 = vmatprep.subr.bf16.mxu0 %v550
    %614 = vmatpush1.bf16.msra.mxu0 %v549
    %615 = vmatprep.mubr.bf16.mxu0 %v378
    %616 = vmatmul.mubr.bf16.gmra.mrb[0].mxu0 %v377
    %v617 = vpop.f32.mrb[0].mxu0
    %v618 = vadd.f32 %v416, %v617
    %v619 = vpop.f32.mrb[0].mxu0
    %v620 = vadd.f32 %v420, %v619
    %v621 = vpop.f32.mrb[0].mxu0
    %v622 = vpop.f32.mrb[0].mxu0
    %623 = vdwg.mxu0
    %vm624 = vcmp.gt.f32.partialorder %v618, 0.0
    %vm625 = vcmp.gt.f32.partialorder %v620, 0.0
    %v626 = vmul.f32 %v618, 0.2
    %v627 = vmul.f32 %v620, 0.2
    %v628 = vsel %vm624, %v618, %v626
    %v629 = vsel %vm625, %v620, %v627
    %v630 = vpack.c.bf16 %v628, %v628
    %v631 = vpack.c.bf16 %v629, %v629
    %v632 = vld [vmem:[#allocation8] sm:$0xf]
    %v633 = vld [vmem:[#allocation8 + $0x4] sm:$0xf]
    %v634 = vld [vmem:[#allocation8 + $0x8] sm:$0xf]
    %v635 = vld [vmem:[#allocation8 + $0xc] sm:$0xf]
    %v636 = vld [vmem:[#allocation8 + $0x10] sm:$0xf]
    %v637 = vld [vmem:[#allocation8 + $0x14] sm:$0xf]
    %v638 = vld [vmem:[#allocation8 + $0x18] sm:$0xf]
    %v639 = vld [vmem:[#allocation8 + $0x1c] sm:$0xf]
    %v640 = vld [vmem:[#allocation8 + $0x20] sm:$0xf]
    %v641 = vld [vmem:[#allocation8 + $0x24] sm:$0xf]
    %v642 = vld [vmem:[#allocation8 + $0x28] sm:$0xf]
    %v643 = vld [vmem:[#allocation8 + $0x2c] sm:$0xf]
    %v644 = vld [vmem:[#allocation8 + $0x30] sm:$0xf]
    %v645 = vld [vmem:[#allocation8 + $0x34] sm:$0xf]
    %v646 = vld [vmem:[#allocation8 + $0x38] sm:$0xf]
    %v647 = vld [vmem:[#allocation8 + $0x3c] sm:$0xf]
    %v648 = vld [vmem:[#allocation8 + $0x40] sm:$0xf]
    %v649 = vld [vmem:[#allocation8 + $0x44] sm:$0xf]
    %v650 = vld [vmem:[#allocation8 + $0x48] sm:$0xf]
    %v651 = vld [vmem:[#allocation8 + $0x4c] sm:$0xf]
    %v652 = vld [vmem:[#allocation8 + $0x50] sm:$0xf]
    %v653 = vld [vmem:[#allocation8 + $0x54] sm:$0xf]
    %v654 = vld [vmem:[#allocation8 + $0x58] sm:$0xf]
    %v655 = vld [vmem:[#allocation8 + $0x5c] sm:$0xf]
    %v656 = vld [vmem:[#allocation8 + $0x60] sm:$0xf]
    %v657 = vld [vmem:[#allocation8 + $0x64] sm:$0xf]
    %v658 = vld [vmem:[#allocation8 + $0x68] sm:$0xf]
    %v659 = vld [vmem:[#allocation8 + $0x6c] sm:$0xf]
    %v660 = vld [vmem:[#allocation8 + $0x70] sm:$0xf]
    %v661 = vld [vmem:[#allocation8 + $0x74] sm:$0xf]
    %v662 = vld [vmem:[#allocation8 + $0x78] sm:$0xf]
    %v663 = vld [vmem:[#allocation8 + $0x7c] sm:$0xf]
    %v664 = vld [vmem:[%s7] sm:$0x1]
    %v666 = vlaneseq
    %v667 = vshrl.u32 %v666, 7
    %v668 = vsub.s32 0, %v667
    %v669 = vrot.slane %v664, %v668
    %v703 = vunpack.c.l.b16 %v632
    %v704 = vunpack.c.l.b16 %v633
    %v705 = vunpack.c.l.b16 %v634
    %v706 = vunpack.c.l.b16 %v635
    %v707 = vunpack.c.l.b16 %v636
    %v708 = vunpack.c.l.b16 %v637
    %v709 = vunpack.c.l.b16 %v638
    %v710 = vunpack.c.l.b16 %v639
    %v711 = vunpack.c.l.b16 %v640
    %v712 = vunpack.c.l.b16 %v641
    %v713 = vunpack.c.l.b16 %v642
    %v714 = vunpack.c.l.b16 %v643
    %v715 = vunpack.c.l.b16 %v644
    %v716 = vunpack.c.l.b16 %v645
    %v717 = vunpack.c.l.b16 %v646
    %v718 = vunpack.c.l.b16 %v647
    %v719 = vunpack.c.l.b16 %v648
    %v720 = vunpack.c.l.b16 %v649
    %v721 = vunpack.c.l.b16 %v650
    %v722 = vunpack.c.l.b16 %v651
    %v723 = vunpack.c.l.b16 %v652
    %v724 = vunpack.c.l.b16 %v653
    %v725 = vunpack.c.l.b16 %v654
    %v726 = vunpack.c.l.b16 %v655
    %v727 = vunpack.c.l.b16 %v656
    %v728 = vunpack.c.l.b16 %v657
    %v729 = vunpack.c.l.b16 %v658
    %v730 = vunpack.c.l.b16 %v659
    %v731 = vunpack.c.l.b16 %v660
    %v732 = vunpack.c.l.b16 %v661
    %v733 = vunpack.c.l.b16 %v662
    %v734 = vunpack.c.l.b16 %v663
    %v735 = vpack.c.b16 %v704, %v703
    %v736 = vpack.c.b16 %v706, %v705
    %v737 = vpack.c.b16 %v708, %v707
    %v738 = vpack.c.b16 %v710, %v709
    %v739 = vpack.c.b16 %v712, %v711
    %v740 = vpack.c.b16 %v714, %v713
    %v741 = vpack.c.b16 %v716, %v715
    %v742 = vpack.c.b16 %v718, %v717
    %v743 = vpack.c.b16 %v720, %v719
    %v744 = vpack.c.b16 %v722, %v721
    %v745 = vpack.c.b16 %v724, %v723
    %v746 = vpack.c.b16 %v726, %v725
    %v747 = vpack.c.b16 %v728, %v727
    %v748 = vpack.c.b16 %v730, %v729
    %v749 = vpack.c.b16 %v732, %v731
    %v750 = vpack.c.b16 %v734, %v733
    %767 = vmatprep.subr.bf16.mxu0 0
    %768 = vmatpush1.bf16.msra.mxu0 %v735
    %769 = vmatprep.subr.bf16.mxu0 0
    %770 = vmatpush1.bf16.msra.mxu0 %v736
    %771 = vmatprep.subr.bf16.mxu0 0
    %772 = vmatpush1.bf16.msra.mxu0 %v737
    %773 = vmatprep.subr.bf16.mxu0 0
    %774 = vmatpush1.bf16.msra.mxu0 %v738
    %775 = vmatprep.subr.bf16.mxu0 0
    %776 = vmatpush1.bf16.msra.mxu0 %v739
    %777 = vmatprep.subr.bf16.mxu0 0
    %778 = vmatpush1.bf16.msra.mxu0 %v740
    %779 = vmatprep.subr.bf16.mxu0 0
    %780 = vmatpush1.bf16.msra.mxu0 %v741
    %781 = vmatprep.subr.bf16.mxu0 0
    %782 = vmatpush1.bf16.msra.mxu0 %v742
    %783 = vmatprep.subr.bf16.mxu0 0
    %784 = vmatpush1.bf16.msra.mxu0 %v743
    %785 = vmatprep.subr.bf16.mxu0 0
    %786 = vmatpush1.bf16.msra.mxu0 %v744
    %787 = vmatprep.subr.bf16.mxu0 0
    %788 = vmatpush1.bf16.msra.mxu0 %v745
    %789 = vmatprep.subr.bf16.mxu0 0
    %790 = vmatpush1.bf16.msra.mxu0 %v746
    %791 = vmatprep.subr.bf16.mxu0 0
    %792 = vmatpush1.bf16.msra.mxu0 %v747
    %793 = vmatprep.subr.bf16.mxu0 0
    %794 = vmatpush1.bf16.msra.mxu0 %v748
    %795 = vmatprep.subr.bf16.mxu0 0
    %796 = vmatpush1.bf16.msra.mxu0 %v749
    %797 = vmatprep.subr.bf16.mxu0 0
    %798 = vmatpush1.bf16.msra.mxu0 %v750
    %799 = vmatprep.mubr.bf16.mxu0 %v631
    %800 = vmatmul.mubr.bf16.gmra.mrb[0].mxu0 %v630
    %v801 = vpop.f32.mrb[0].mxu0
    %v802 = vadd.f32 %v669, %v801
    %v803 = vpop.f32.mrb[0].mxu0
    %v804 = vpop.f32.mrb[0].mxu0
    %v805 = vpop.f32.mrb[0].mxu0
    %806 = vdwg.mxu0
    %vm807 = vcmp.gt.f32.partialorder %v802, 0.0
    %v808 = vmul.f32 %v802, 0.2
    %v809 = vsel %vm807, %v802, %v808
    %v810 = vpack.c.bf16 %v809, %v809
    %v811 = vld [vmem:[#allocation10] sm:$0xf]
    %v812 = vld [vmem:[#allocation10 + $0x4] sm:$0xf]
    %v813 = vld [vmem:[#allocation10 + $0x8] sm:$0xf]
    %v814 = vld [vmem:[#allocation10 + $0xc] sm:$0xf]
    %v815 = vld [vmem:[#allocation10 + $0x10] sm:$0xf]
    %v816 = vld [vmem:[#allocation10 + $0x14] sm:$0xf]
    %v817 = vld [vmem:[#allocation10 + $0x18] sm:$0xf]
    %v818 = vld [vmem:[#allocation10 + $0x1c] sm:$0xf]
    %v819 = vld [vmem:[#allocation10 + $0x20] sm:$0xf]
    %v820 = vld [vmem:[#allocation10 + $0x24] sm:$0xf]
    %v821 = vld [vmem:[#allocation10 + $0x28] sm:$0xf]
    %v822 = vld [vmem:[#allocation10 + $0x2c] sm:$0xf]
    %v823 = vld [vmem:[#allocation10 + $0x30] sm:$0xf]
    %v824 = vld [vmem:[#allocation10 + $0x34] sm:$0xf]
    %v825 = vld [vmem:[#allocation10 + $0x38] sm:$0xf]
    %v826 = vld [vmem:[#allocation10 + $0x3c] sm:$0xf]
    %v827 = vld [vmem:[%s9] sm:$0x1]
    %v829 = vlaneseq
    %v830 = vshrl.u32 %v829, 7
    %v831 = vsub.s32 0, %v830
    %v832 = vrot.slane %v827, %v831
    %v850 = vunpack.c.l.b16 %v811
    %v851 = vunpack.c.l.b16 %v812
    %v852 = vunpack.c.l.b16 %v813
    %v853 = vunpack.c.l.b16 %v814
    %v854 = vunpack.c.l.b16 %v815
    %v855 = vunpack.c.l.b16 %v816
    %v856 = vunpack.c.l.b16 %v817
    %v857 = vunpack.c.l.b16 %v818
    %v858 = vunpack.c.l.b16 %v819
    %v859 = vunpack.c.l.b16 %v820
    %v860 = vunpack.c.l.b16 %v821
    %v861 = vunpack.c.l.b16 %v822
    %v862 = vunpack.c.l.b16 %v823
    %v863 = vunpack.c.l.b16 %v824
    %v864 = vunpack.c.l.b16 %v825
    %v865 = vunpack.c.l.b16 %v826
    %v866 = vpack.c.b16 %v851, %v850
    %v867 = vpack.c.b16 %v853, %v852
    %v868 = vpack.c.b16 %v855, %v854
    %v869 = vpack.c.b16 %v857, %v856
    %v870 = vpack.c.b16 %v859, %v858
    %v871 = vpack.c.b16 %v861, %v860
    %v872 = vpack.c.b16 %v863, %v862
    %v873 = vpack.c.b16 %v865, %v864
    %882 = vmatprep.subr.bf16.mxu0 0
    %883 = vmatpush1.bf16.msra.mxu0 %v866
    %884 = vmatprep.subr.bf16.mxu0 0
    %885 = vmatpush1.bf16.msra.mxu0 %v867
    %886 = vmatprep.subr.bf16.mxu0 0
    %887 = vmatpush1.bf16.msra.mxu0 %v868
    %888 = vmatprep.subr.bf16.mxu0 0
    %889 = vmatpush1.bf16.msra.mxu0 %v869
    %890 = vmatprep.subr.bf16.mxu0 0
    %891 = vmatpush1.bf16.msra.mxu0 %v870
    %892 = vmatprep.subr.bf16.mxu0 0
    %893 = vmatpush1.bf16.msra.mxu0 %v871
    %894 = vmatprep.subr.bf16.mxu0 0
    %895 = vmatpush1.bf16.msra.mxu0 %v872
    %896 = vmatprep.subr.bf16.mxu0 0
    %897 = vmatpush1.bf16.msra.mxu0 %v873
    %898 = vmatprep.subr.bf16.mxu0 0
    %899 = vmatpush1.bf16.msra.mxu0 0
    %900 = vmatprep.subr.bf16.mxu0 0
    %901 = vmatpush1.bf16.msra.mxu0 0
    %902 = vmatprep.subr.bf16.mxu0 0
    %903 = vmatpush1.bf16.msra.mxu0 0
    %904 = vmatprep.subr.bf16.mxu0 0
    %905 = vmatpush1.bf16.msra.mxu0 0
    %906 = vmatprep.subr.bf16.mxu0 0
    %907 = vmatpush1.bf16.msra.mxu0 0
    %908 = vmatprep.subr.bf16.mxu0 0
    %909 = vmatpush1.bf16.msra.mxu0 0
    %910 = vmatprep.subr.bf16.mxu0 0
    %911 = vmatpush1.bf16.msra.mxu0 0
    %912 = vmatprep.subr.bf16.mxu0 0
    %913 = vmatpush1.bf16.msra.mxu0 0
    %914 = vmatprep.mubr.bf16.mxu0 0
    %915 = vmatmul.mubr.bf16.gmra.mrb[0].mxu0 %v810
    %v916 = vpop.f32.mrb[0].mxu0
    %v917 = vadd.f32 %v832, %v916
    %v918 = vpop.f32.mrb[0].mxu0
    %v919 = vpop.f32.mrb[0].mxu0
    %v920 = vpop.f32.mrb[0].mxu0
    %921 = vdwg.mxu0
    %vm922 = vcmp.gt.f32.partialorder %v917, 0.0
    %v923 = vmul.f32 %v917, 0.2
    %v924 = vsel %vm922, %v917, %v923
    %v925 = vld [vmem:[%s10] sm:$0x1]
    %v926 = vunpack.c.l.bf16 %v925
    %v927 = vlaneseq
    %v928 = vshrl.u32 %v927, 7
    %v929 = vsub.s32 0, %v928
    %v930 = vrot.slane %v926, %v929
    %v931 = vmul.f32 %v924, %v930
    %932 = vadd.xlane.f32.xlu0 %v931
    %v933 = vpop.xlane.xlu0 %932
    %v934 = vld [vmem:[#allocation2] sm:$0x1]
    %v936 = vlaneseq
    %v937 = vshrl.u32 %v936, 7
    %v938 = vsub.s32 0, %v937
    %v939 = vrot.slane %v934, %v938
    %v941 = vadd.f32 %v933, %v939
    %v942 = vsub.f32 0.0, %v941
    %v943 = vmul.f32 %v942, 1.442695
    %v944 = vpow.pop %v943
    %v945 = vadd.f32 %v944, 1.0
    %v946 = vrcp.pop %v945
    %vm947 = vcmask 7168
    %948 = vst.msk [vmem:[%s12] sm:$0xff] %vm947, %v946
    // Predicated region
    $region70: #{tpu_custom_call.1} parent=1 // pred_check
      _
    $region71: #{tpu_custom_call.1} parent=1 // pred_check_branch
      %950 = sbr.rel (0) target = $region73
    $region72: #{tpu_custom_call.1} parent=1 // pred_region
      _
    $region73: #{tpu_custom_call.1} parent=1 // pred_fallthru
      _
    // Predicated region
    $region74: #{tpu_custom_call.1} parent=1 // pred_check
      _
    $region75: #{tpu_custom_call.1} parent=1 // pred_check_branch
      %952 = sbr.rel (0) target = $region77
    $region76: #{tpu_custom_call.1} parent=1 // pred_region
      _
    $region77: #{tpu_custom_call.1} parent=1 // pred_fallthru
      _
    %953 = vsyncpa [#allocation4], 1
    %954 = vsyncpa [#allocation6], 1
    %955 = vsyncpa [#allocation9], 1

</llo_original>
